<compile_context>
chip_gen: v7x
topology: tpu7x:2x2x1
jax: 0.10.0
libtpu: 0.0.40
codegen_flags: <defaults>
</compile_context>

<pallas_src>
import jax
import jax.numpy as jnp
import numpy as np
from jax.experimental import pallas as pl
from jax.experimental.pallas import tpu as pltpu


def attention_aggregator_kernel(x_ref, mask_ref, w_ref, b_ref, o_ref):
    """Single-shot kernel; operands live whole in VMEM, bias scalar in SMEM.

    x_ref    : (B, N, D)  member embeddings
    mask_ref : (B, N)     additive mask (0 / -1e9 style)
    w_ref    : (1, D)     attention Linear weight (nn.Linear(D, 1).weight)
    b_ref    : (1,)       attention Linear bias (SMEM scalar)
    o_ref    : (B, D)     aggregated embedding
    """
    x = x_ref[...]                                              # (B, N, D) f32
    w = w_ref[...]                                              # (1, D)
    bias = b_ref[0]                                             # scalar via SMEM

    # attention_out[b, n] = tanh(x[b, n, :] . w + bias)
    # One fused multiply + lane reduce across the whole batch.
    scores = jnp.tanh(jnp.sum(x * w, axis=-1) + bias)           # (B, N)

    # softmax over the member axis (dim=1 of the PyTorch (B, N, 1) tensor).
    logits = scores + mask_ref[...]                             # (B, N)
    m = jnp.max(logits, axis=-1, keepdims=True)                 # (B, 1)
    e = jnp.exp(logits - m)                                     # (B, N)
    weight = e / jnp.sum(e, axis=-1, keepdims=True)             # (B, N)

    # ret[b, d] = sum_n x[b, n, d] * weight[b, n]
    # Single batched weighted sublane-reduce; one 2-D store.
    o_ref[...] = jnp.sum(x * weight[:, :, None], axis=1)        # (B, D)


def attention_aggregator_forward(x, mask, params):
    """Pallas-backed forward. Returns (B, D), matching the PyTorch module."""
    w_att, b_att = params                     # (1, D), (1,)
    B, N, D = x.shape
    if mask is None:
        mask = jnp.zeros((B, N), jnp.float32)

    return pl.pallas_call(
        attention_aggregator_kernel,
        out_shape=jax.ShapeDtypeStruct((B, D), jnp.float32),
        in_specs=[
            pl.BlockSpec(memory_space=pltpu.MemorySpace.VMEM),   # x
            pl.BlockSpec(memory_space=pltpu.MemorySpace.VMEM),   # mask
            pl.BlockSpec(memory_space=pltpu.MemorySpace.VMEM),   # w_att
            pl.BlockSpec(memory_space=pltpu.MemorySpace.SMEM),   # b_att (scalar)
        ],
        out_specs=pl.BlockSpec(memory_space=pltpu.MemorySpace.VMEM),
    )(x, mask, w_att, b_att)


def reference_forward(x, mask, params):
    """Pure-JAX reference mirroring the PyTorch semantics."""
    w_att, b_att = params
    att = jnp.tanh(x @ w_att.T + b_att)                         # (B, N, 1)
    if mask is not None:
        att = att + mask[:, :, None]
    weight = jax.nn.softmax(att, axis=1)                        # (B, N, 1)
    ret = jnp.matmul(jnp.swapaxes(x, 2, 1), weight)[..., 0]     # (B, D)
    return ret


def init_params(key, output_dim):
    """nn.Linear(output_dim, 1) default-style init: weight (1, D), bias (1,)."""
    k_w, k_b = jax.random.split(key)
    bound = 1.0 / np.sqrt(output_dim)
    w = jax.random.uniform(k_w, (1, output_dim), jnp.float32, -bound, bound)
    b = jax.random.uniform(k_b, (1,), jnp.float32, -bound, bound)
    return w, b


if __name__ == "__main__":
    output_dim = 32   # D
    batch = 2         # B
    n_items = 8       # N (members / items aggregated over)

    key = jax.random.PRNGKey(0)
    k_params, k_x, k_mask = jax.random.split(key, 3)

    params = init_params(k_params, output_dim)
    x = jax.random.normal(k_x, (batch, n_items, output_dim), jnp.float32)
    keep = jax.random.bernoulli(k_mask, 0.75, (batch, n_items))
    mask = jnp.where(keep, 0.0, -1e9).astype(jnp.float32)

    # masked path
    out = attention_aggregator_forward(x, mask, params)
    out = jax.block_until_ready(out)
    ref = reference_forward(x, mask, params)
    assert out.shape == (batch, output_dim), out.shape
    np.testing.assert_allclose(np.asarray(out), np.asarray(ref), rtol=1e-5, atol=1e-5)

    # mask=None path of the module's forward
    out_nm = jax.block_until_ready(attention_aggregator_forward(x, None, params))
    ref_nm = reference_forward(x, None, params)
    np.testing.assert_allclose(np.asarray(out_nm), np.asarray(ref_nm), rtol=1e-5, atol=1e-5)

    print("KERNEL_OK")
</pallas_src>

<mosaic_0001>
module attributes {stable_mosaic.version = 11 : i64} {
  func.func @attention_aggregator_kernel(%arg0: memref<2x8x32xf32, #tpu.memory_space<vmem>>, %arg1: memref<2x8xf32, #tpu.memory_space<vmem>>, %arg2: memref<1x32xf32, #tpu.memory_space<vmem>>, %arg3: memref<1xf32, #tpu.memory_space<smem>>, %arg4: memref<2x32xf32, #tpu.memory_space<vmem>>) attributes {dimension_semantics = [], scalar_prefetch = 0 : i64, scratch_operands = 0 : i64, tpu.core_type = #tpu.core_type<tc>} {
    %c0 = arith.constant 0 : index
    %c0_0 = arith.constant 0 : index
    %c0_1 = arith.constant 0 : index
    %0 = vector.load %arg0[%c0, %c0_0, %c0_1] : memref<2x8x32xf32, #tpu.memory_space<vmem>>, vector<2x8x32xf32>
    %c0_2 = arith.constant 0 : index
    %c0_3 = arith.constant 0 : index
    %1 = vector.load %arg2[%c0_2, %c0_3] : memref<1x32xf32, #tpu.memory_space<vmem>>, vector<1x32xf32>
    %c0_4 = arith.constant 0 : index
    %2 = memref.load %arg3[%c0_4] : memref<1xf32, #tpu.memory_space<smem>>
    %3 = vector.shape_cast %1 : vector<1x32xf32> to vector<1x1x32xf32>
    %4 = vector.broadcast %3 : vector<1x1x32xf32> to vector<2x8x32xf32>
    %5 = arith.mulf %0, %4 : vector<2x8x32xf32>
    %cst = arith.constant dense<0.000000e+00> : vector<2x8xf32>
    %6 = vector.multi_reduction <add>, %5, %cst [2] : vector<2x8x32xf32> to vector<2x8xf32>
    %7 = vector.broadcast %2 : f32 to vector<2x8xf32>
    %8 = arith.addf %6, %7 : vector<2x8xf32>
    %9 = math.tanh %8 : vector<2x8xf32>
    %c0_5 = arith.constant 0 : index
    %c0_6 = arith.constant 0 : index
    %10 = vector.load %arg1[%c0_5, %c0_6] : memref<2x8xf32, #tpu.memory_space<vmem>>, vector<2x8xf32>
    %11 = arith.addf %9, %10 : vector<2x8xf32>
    %cst_7 = arith.constant dense<0xFF800000> : vector<2xf32>
    %12 = vector.multi_reduction <maximumf>, %11, %cst_7 [1] : vector<2x8xf32> to vector<2xf32>
    %13 = vector.shape_cast %12 : vector<2xf32> to vector<2x1xf32>
    %14 = vector.broadcast %13 : vector<2x1xf32> to vector<2x8xf32>
    %15 = arith.subf %11, %14 : vector<2x8xf32>
    %16 = math.exp %15 : vector<2x8xf32>
    %cst_8 = arith.constant dense<0.000000e+00> : vector<2xf32>
    %17 = vector.multi_reduction <add>, %16, %cst_8 [1] : vector<2x8xf32> to vector<2xf32>
    %18 = vector.shape_cast %17 : vector<2xf32> to vector<2x1xf32>
    %19 = vector.broadcast %18 : vector<2x1xf32> to vector<2x8xf32>
    %20 = arith.divf %16, %19 : vector<2x8xf32>
    %21 = vector.shape_cast %20 : vector<2x8xf32> to vector<2x8x1xf32>
    %22 = vector.broadcast %21 : vector<2x8x1xf32> to vector<2x8x32xf32>
    %23 = arith.mulf %0, %22 : vector<2x8x32xf32>
    %cst_9 = arith.constant dense<0.000000e+00> : vector<2x32xf32>
    %24 = vector.multi_reduction <add>, %23, %cst_9 [1] : vector<2x8x32xf32> to vector<2x32xf32>
    %c0_10 = arith.constant 0 : index
    %c0_11 = arith.constant 0 : index
    %25 = vector.load %arg4[%c0_10, %c0_11] : memref<2x32xf32, #tpu.memory_space<vmem>>, vector<2x32xf32>
    tpu.vector_store %arg4[%c0_10, %c0_11], %24 {strides = array<i32>} : memref<2x32xf32, #tpu.memory_space<vmem>>, vector<2x32xf32>,
    return
  }
}

</mosaic_0001>

<llo_original>
// kernel: tpu_custom_call.1
$region0: #{tpu_custom_call.1}
  #allocation0 [shape = 'u32[]', space=smem, size = 0x4, offset = 0x4, fixed_abs, tag = 'smem constant byte address 0x4 - core index']
  #allocation1 [shape = 'u32[144,128]{1,0:T(1,128)}', space=vmem, size = 0x12000, scoped, tag = 'internal scratch']
  #allocation2 [shape = 'f32[1]{0:T(128)S(6)}', space=smem, size = 0x200, scoped, tag = 'scoped memory for tpu_custom_call.1']
  %s0 = inlined_call_operand.hbm [shape: f32[2,8,32], index: 0, kind: input, shape index: {}]
  %s1 = inlined_call_operand.vmem [shape: f32[2,8], index: 1, kind: input, shape index: {}]
  %s2 = inlined_call_operand.vmem [shape: f32[1,32], index: 2, kind: input, shape index: {}]
  %s3 = inlined_call_operand.<no memory space> [shape: f32[1], index: 3, kind: input, shape index: {}]
  %s4 = inlined_call_operand.hbm [shape: f32[2,32], index: 4, kind: output, shape index: {}]
  %s5 = sld [smem:[#allocation0]]
  $region30: #{tpu_custom_call.1} parent=0
    _
  %s7 = ssub.s32 1, %s5
  %s8 = scalar_select 0, %s7, %s5
  %9 = sst [smem:[#allocation2]] %s3
  $region1: #{tpu_custom_call.1} parent=0
    #allocation3 [shape = 'u8[8192]{0}', space=vmem, size = 0x2000, scoped, tag = 'input window, operand 0, single buffered']
    #allocation4 [shape = 's32[1]{0}', space=sflag, size = 0x4, scoped, tag = 'scoped memory for tpu_custom_call.1']
    #allocation5 [shape = 's32[1]{0}', space=sflag, size = 0x4, scoped, tag = 'scoped memory for tpu_custom_call.1']
    #allocation6 [shape = 'u8[1024]{0}', space=vmem, size = 0x400, scoped, tag = 'output window, operand 0, single buffered']
    %10 = vsyncpa [#allocation4], 0
    %11 = vsyncpa [#allocation5], 0
    // Predicated region
    $region2: #{tpu_custom_call.1} parent=1 // pred_check
      _
    $region3: #{tpu_custom_call.1} parent=1 // pred_check_branch
      %13 = sbr.rel (0) target = $region5
    $region4: #{tpu_custom_call.1} parent=1 // pred_region
      %s15 = ssub.s32 256, 256
      %16 = vsyncadd [#allocation4], %s15
      %s17 = sshll.u32 [#allocation3], 4
      %s18 = int_to_ptr.vmem [resolvable:$true] %s17
      %23 = dma.hbm_to_vmem [thread:$0]  %s0, 256, %s18, [#allocation4], 128, 128, 8
    $region5: #{tpu_custom_call.1} parent=1 // pred_fallthru
      _
    // Predicated region
    $region6: #{tpu_custom_call.1} parent=1 // pred_check
      _
    $region7: #{tpu_custom_call.1} parent=1 // pred_check_branch
      %25 = sbr.rel (0) target = $region9
    $region8: #{tpu_custom_call.1} parent=1 // pred_region
      _
    $region9: #{tpu_custom_call.1} parent=1 // pred_fallthru
      _
    // Predicated region
    $region10: #{tpu_custom_call.1} parent=1 // pred_check
      _
    $region11: #{tpu_custom_call.1} parent=1 // pred_check_branch
      %27 = sbr.rel (0) target = $region13
    $region12: #{tpu_custom_call.1} parent=1 // pred_region
      _
    $region13: #{tpu_custom_call.1} parent=1 // pred_fallthru
      _
    // Predicated region
    $region14: #{tpu_custom_call.1} parent=1 // pred_check
      _
    $region15: #{tpu_custom_call.1} parent=1 // pred_check_branch
      %29 = sbr.rel (0) target = $region17
    $region16: #{tpu_custom_call.1} parent=1 // pred_region
      _
    $region17: #{tpu_custom_call.1} parent=1 // pred_fallthru
      _
    // Predicated region
    $region18: #{tpu_custom_call.1} parent=1 // pred_check
      _
    $region19: #{tpu_custom_call.1} parent=1 // pred_check_branch
      %31 = sbr.rel (0) target = $region21
    $region20: #{tpu_custom_call.1} parent=1 // pred_region
      %32 = dma.done [#allocation4], 256
    $region21: #{tpu_custom_call.1} parent=1 // pred_fallthru
      _
    %v33 = vld [vmem:[#allocation3] sm:$0xff]
    %v34 = vld [vmem:[#allocation3 + $0x8] sm:$0xff]
    %v35 = vld [vmem:[%s2] sm:$0x1]
    %s36 = sld [smem:[#allocation2]]
    %v38 = vlaneseq
    %v39 = vshrl.u32 %v38, 7
    %v40 = vsub.s32 0, %v39
    %v41 = vrot.slane %v35, %v40
    %v43 = vmul.f32 %v33, %v41
    %v44 = vmul.f32 %v34, %v41
    %vm45 = vcmask 261120
    %v46 = vsel %vm45, %v43, 0.0
    %47 = vadd.xlane.f32.xlu0 %v46
    %v48 = vpop.xlane.xlu0 %47
    %v49 = vsel %vm45, %v44, 0.0
    %50 = vadd.xlane.f32.xlu0 %v49
    %v51 = vpop.xlane.xlu0 %50
    %v52 = vstv %s36
    %v53 = vadd.f32 %v48, %v52
    %v54 = vadd.f32 %v51, %v52
    %v55 = vtanh.pop %v53
    %v56 = vtanh.pop %v54
    %v57 = vld [vmem:[%s1] sm:$0x3]
    %v59 = vlaneseq
    %v60 = vshrl.u32 %v59, 7
    %v61 = vsub.s32 0, %v60
    %v62 = vrot.slane %v57, %v61
    %64 = vbcast.lane.b32.xlu0 %v62, 256
    %v65 = vpop.permute.xlu0 %64
    %v66 = vlaneseq
    %v67 = vshrl.u32 %v66, 7
    %v68 = vsub.s32 1, %v67
    %v69 = vrot.slane %v57, %v68
    %71 = vbcast.lane.b32.xlu0 %v69, 256
    %v72 = vpop.permute.xlu0 %71
    %v75 = vadd.f32 %v55, %v65
    %v76 = vadd.f32 %v56, %v72
    %79 = vset.pattern.permute.xlu0 0
    %80 = vperm.xlu0 %79, %v75
    %v81 = vpop.permute.xlu0 %80
    %82 = vset.pattern.permute.xlu0 0
    %83 = vperm.xlu0 %82, %v76
    %v84 = vpop.permute.xlu0 %83
    %v85 = vlaneseq
    %v86 = vand.u32 %v85, 127
    %v87 = vlaneseq
    %v88 = vshrl.u32 %v87, 7
    %v89 = vsub.s32 %v86, %v88
    %v90 = vrot.slane %v81, %v89
    %v91 = vlaneseq
    %v92 = vshrl.u32 %v91, 7
    %v93 = vsub.s32 %v86, %v92
    %v94 = vrot.slane %v84, %v93
    %vm95 = vcmask 1041409
    %v96 = vsel %vm95, %v94, %v90
    %vm98 = vcmask 58368
    %v99 = vsel %vm98, %v96, -inf
    %100 = vmax.xlane.f32.xlu0 %v99
    %v101 = vpop.xlane.xlu0 %100
    %v103 = vlaneseq
    %v104 = vshrl.u32 %v103, 7
    %v105 = vsub.s32 0, %v104
    %v106 = vrot.slane %v101, %v105
    %v107 = vlaneseq
    %v108 = vshrl.u32 %v107, 7
    %v109 = vsub.s32 1, %v108
    %v110 = vrot.slane %v101, %v109
    %v113 = vsub.f32 %v75, %v106
    %v114 = vsub.f32 %v76, %v110
    %v115 = vmul.f32 %v113, 1.442695
    %v116 = vpow.pop %v115
    %v117 = vmul.f32 %v114, 1.442695
    %v118 = vpow.pop %v117
    %121 = vset.pattern.permute.xlu0 0
    %122 = vperm.xlu0 %121, %v116
    %v123 = vpop.permute.xlu0 %122
    %124 = vset.pattern.permute.xlu0 0
    %125 = vperm.xlu0 %124, %v118
    %v126 = vpop.permute.xlu0 %125
    %v127 = vlaneseq
    %v128 = vshrl.u32 %v127, 7
    %v129 = vsub.s32 %v86, %v128
    %v130 = vrot.slane %v123, %v129
    %v131 = vlaneseq
    %v132 = vshrl.u32 %v131, 7
    %v133 = vsub.s32 %v86, %v132
    %v134 = vrot.slane %v126, %v133
    %v135 = vsel %vm95, %v134, %v130
    %v137 = vsel %vm98, %v135, 0.0
    %138 = vadd.xlane.f32.xlu0 %v137
    %v139 = vpop.xlane.xlu0 %138
    %v141 = vlaneseq
    %v142 = vshrl.u32 %v141, 7
    %v143 = vsub.s32 0, %v142
    %v144 = vrot.slane %v139, %v143
    %v145 = vlaneseq
    %v146 = vshrl.u32 %v145, 7
    %v147 = vsub.s32 1, %v146
    %v148 = vrot.slane %v139, %v147
    %v151 = vrcp.pop %v144
    %v152 = vmul.f32 %v116, %v151
    %v153 = vrcp.pop %v148
    %v154 = vmul.f32 %v118, %v153
    %156 = vset.pattern.permute.xlu0 0
    %157 = vperm.xlu0 %156, %v152
    %v158 = vpop.permute.xlu0 %157
    %161 = vset.pattern.permute.xlu0 0
    %162 = vperm.xlu0 %161, %v154
    %v163 = vpop.permute.xlu0 %162
    %v165 = vmul.f32 %v33, %v158
    %v166 = vmul.f32 %v34, %v163
    %v167 = vsel %vm45, %v165, 0.0
    %v168 = vrot.slane %v167, 4
    %v169 = vadd.f32 %v167, %v168
    %v170 = vrot.slane %v169, 2
    %v171 = vadd.f32 %v169, %v170
    %v172 = vrot.slane %v171, 1
    %v173 = vadd.f32 %v171, %v172
    %v174 = vsel %vm45, %v166, 0.0
    %v175 = vrot.slane %v174, 4
    %v176 = vadd.f32 %v174, %v175
    %v177 = vrot.slane %v176, 2
    %v178 = vadd.f32 %v176, %v177
    %v179 = vrot.slane %v178, 1
    %v180 = vadd.f32 %v178, %v179
    %v183 = vsel %vm95, %v180, %v173
    %vm185 = vcmask 254976
    %186 = vst.msk [vmem:[#allocation6] sm:$0x3] %vm185, %v183
    // Predicated region
    $region22: #{tpu_custom_call.1} parent=1 // pred_check
      _
    $region23: #{tpu_custom_call.1} parent=1 // pred_check_branch
      %188 = sbr.rel (0) target = $region25
    $region24: #{tpu_custom_call.1} parent=1 // pred_region
      %s190 = ssub.s32 32, 32
      %191 = vsyncadd [#allocation5], %s190
      %s193 = sshll.u32 [#allocation6], 4
      %s194 = int_to_ptr.vmem [resolvable:$true] %s193
      %196 = dma.vmem_to_hbm [thread:$0]  %s194, 32, %s4, [#allocation5]
    $region25: #{tpu_custom_call.1} parent=1 // pred_fallthru
      _
    // Predicated region
    $region26: #{tpu_custom_call.1} parent=1 // pred_check
      _
    $region27: #{tpu_custom_call.1} parent=1 // pred_check_branch
      %198 = sbr.rel (0) target = $region29
    $region28: #{tpu_custom_call.1} parent=1 // pred_region
      %199 = dma.done [#allocation5], 32
    $region29: #{tpu_custom_call.1} parent=1 // pred_fallthru
      _
    %200 = vsyncpa [#allocation4], 1
    %201 = vsyncpa [#allocation5], 1

</llo_original>
